<compile_context>
chip_gen: v6e
topology: v6e:2x2x1
jax: 0.10.0
libtpu: 0.0.40
codegen_flags: <defaults>
</compile_context>

<pallas_src>
import jax
import jax.numpy as jnp
from jax.experimental import pallas as pl
from jax.experimental.pallas import tpu as pltpu


def _downsample_kernel(x_ref, w_ref, b_ref, o_ref, acc_ref):
    # x_ref  : [Hp, Wo, 3*Cin]     padded-H slab at padded depth 2*d + kd,
    #                              W-taps pre-folded into channels (kw, cin)
    # w_ref  : [3, 9*Cin, Cout_pad]   kd major, K order = (kh, kw, cin)
    # b_ref  : [1, Cout_pad]          f32 bias
    # o_ref  : [Ho*Wo, Cout_pad]      lane-dense 2-D output slab
    # acc_ref: [Ho*Wo, Cout_pad] f32  persists across the kd grid axis
    kd = pl.program_id(2)
    _, Wo, _ = x_ref.shape
    M, Cp = o_ref.shape
    Ho = M // Wo
    K = w_ref.shape[1]                       # 9 * Cin

    @pl.when(kd == 0)
    def _init():
        # Bias-initialised accumulator: saves one full VPU + vst pass at the end.
        acc_ref[...] = jnp.broadcast_to(b_ref[...].astype(jnp.float32), (M, Cp))

    slab = x_ref[...]                        # [Hp, Wo, 3*Cin], native dtype
    # Fold the 3 H-taps into the contraction dim.  The stride-2 row selection is
    # an even/odd split of the outermost (vreg-row) dim: a free reshape + static
    # slices, no strided slicing, no relayout of the (sublane=Wo, lane=C) layout.
    pairs0 = slab[0:2 * Ho].reshape(Ho, 2, Wo, -1)       # rows 2h   / 2h+1
    pairs1 = slab[1:2 * Ho + 1].reshape(Ho, 2, Wo, -1)   # rows 2h+1 / 2h+2
    tap = jnp.concatenate(
        [pairs0[:, 0], pairs0[:, 1], pairs1[:, 1]], axis=-1)   # [Ho, Wo, 9*Cin]

    # One MXU matmul per kd step with K = 9*Cin (relayout-free when Wo is a
    # multiple of the sublane width; Mosaic has no multi-free-dim dot_general,
    # so the (Ho, Wo) -> Ho*Wo merge stays).
    acc_ref[...] += jnp.dot(tap.reshape(M, K), w_ref[kd],
                            preferred_element_type=jnp.float32)

    @pl.when(kd == 2)
    def _store():
        o_ref[...] = acc_ref[...].astype(o_ref.dtype)


def _pick_vmem_limit():
    """VMEM limit with headroom; never the full physical size.

    v5e/v6e: 128 MiB physical -> ~112 MiB; v7x: 64 MiB physical -> ~48 MiB.
    """
    fallback = 64 * 1024 * 1024
    try:
        cap = getattr(pltpu.get_tpu_info(), "vmem_capacity_bytes", None)
    except Exception:
        return fallback
    if not cap:
        return fallback
    return int(max(32 * 1024 * 1024,
                   min(int(cap) - 16 * 1024 * 1024, 112 * 1024 * 1024)))


def downsample_conv3d(x_ncdhw, weight_oidhw, bias, *, compute_dtype=None):
    """Conv3d(kernel=3, stride=2, padding=1), matching nn.Conv3d semantics.

    x_ncdhw      : [N, Cin, D, H, W]
    weight_oidhw : [Cout, Cin, 3, 3, 3]
    bias         : [Cout]
    compute_dtype: optional dtype for activations/weights in the kernel
                   (e.g. jnp.bfloat16); accumulation is always f32 and the
                   output keeps the original input dtype.
    returns      : [N, Cout, Do, Ho, Wo]
    """
    N, Cin, D, H, W = x_ncdhw.shape
    Cout = weight_oidhw.shape[0]
    Do = (D - 1) // 2 + 1
    Ho = (H - 1) // 2 + 1
    Wo = (W - 1) // 2 + 1
    Dp, Hp, Wp = D + 2, H + 2, W + 2
    # Geometry the kernel's slicing relies on (stride=2, padding=1, kernel=3).
    assert Dp >= 2 * Do + 1 and Hp >= 2 * Ho + 1 and Wp >= 2 * Wo + 1

    out_dtype = x_ncdhw.dtype
    # Lane-dense output stores (unmasked vst).  TODO(synk): consider rounding to
    # 256 for large Cout on v6e/v7x to match the 2x256 MXU.
    Cout_pad = ((Cout + 127) // 128) * 128

    if compute_dtype is not None:
        x_ncdhw = x_ncdhw.astype(compute_dtype)
        weight_oidhw = weight_oidhw.astype(compute_dtype)

    # ---- XLA-side glue: layout + pad + W-tap folding -----------------------
    x_ndhwc = jnp.transpose(x_ncdhw, (0, 2, 3, 4, 1))
    x_pad = jnp.pad(x_ndhwc, ((0, 0), (1, 1), (1, 1), (1, 1), (0, 0)))
    # xw[..., wo, kw*Cin + c] = x_pad[..., 2*wo + kw, c]
    xw = jnp.concatenate(
        [x_pad[:, :, :, kw:kw + 2 * Wo - 1:2, :] for kw in range(3)], axis=-1)
    # xw : [N, Dp, Hp, Wo, 3*Cin]

    # weights: [Cout, Cin, 3,3,3] -> [kd, kh, kw, cin, cout] -> [3, 9*Cin, Cout_pad]
    w = jnp.transpose(weight_oidhw, (2, 3, 4, 1, 0)).reshape(3, 9 * Cin, Cout)
    w = jnp.pad(w, ((0, 0), (0, 0), (0, Cout_pad - Cout)))
    b = jnp.pad(bias.astype(jnp.float32).reshape(1, Cout),
                ((0, 0), (0, Cout_pad - Cout)))

    def _spec(shape, index_map, single_buffer):
        if single_buffer:
            # Grid-invariant block: one VMEM copy is enough.
            return pl.BlockSpec(shape, index_map, pipeline_mode=pl.Buffered(1))
        return pl.BlockSpec(shape, index_map)

    def _call(single_buffer_params):
        return pl.pallas_call(
            _downsample_kernel,
            out_shape=jax.ShapeDtypeStruct((N, Do, Ho * Wo, Cout_pad), out_dtype),
            grid_spec=pltpu.PrefetchScalarGridSpec(
                num_scalar_prefetch=0,
                grid=(N, Do, 3),                      # kd innermost (reduction)
                in_specs=[
                    pl.BlockSpec((None, None, Hp, Wo, 3 * Cin),
                                 lambda n, d, kd: (n, 2 * d + kd, 0, 0, 0)),
                    _spec((3, 9 * Cin, Cout_pad), lambda n, d, kd: (0, 0, 0),
                          single_buffer_params),
                    _spec((1, Cout_pad), lambda n, d, kd: (0, 0),
                          single_buffer_params),
                ],
                out_specs=pl.BlockSpec((None, None, Ho * Wo, Cout_pad),
                                       lambda n, d, kd: (n, d, 0, 0)),
                scratch_shapes=[pltpu.VMEM((Ho * Wo, Cout_pad), jnp.float32)],
            ),
            compiler_params=pltpu.CompilerParams(
                dimension_semantics=("parallel", "parallel", "arbitrary"),
                vmem_limit_bytes=_pick_vmem_limit()),
        )(xw, w, b)

    try:
        out = _call(True)
    except Exception:
        # pl.Buffered(1) single-buffering is a pure VMEM optimisation; fall back
        # to default double-buffering if this JAX/Mosaic build rejects it.
        out = _call(False)

    # strip channel padding, back to NCDHW (free metadata ops)
    out = out.reshape(N, Do, Ho, Wo, Cout_pad)[..., :Cout]
    return jnp.transpose(out, (0, 4, 1, 2, 3))


if __name__ == "__main__":
    key = jax.random.PRNGKey(0)
    k_x, k_w, k_b = jax.random.split(key, 3)

    N, Cin, Cout = 2, 4, 8
    D = H = W = 16

    x = jax.random.normal(k_x, (N, Cin, D, H, W), dtype=jnp.float32)
    weight = jax.random.normal(k_w, (Cout, Cin, 3, 3, 3), dtype=jnp.float32) * 0.1
    bias = jax.random.normal(k_b, (Cout,), dtype=jnp.float32) * 0.1

    # Reference: XLA's conv with the same semantics as nn.Conv3d(3, stride=2, pad=1).
    y_ref = jax.lax.conv_general_dilated(
        x, weight, window_strides=(2, 2, 2),
        padding=((1, 1), (1, 1), (1, 1)),
        dimension_numbers=("NCDHW", "OIDHW", "NCDHW"),
    ) + bias.reshape(1, Cout, 1, 1, 1)

    # f32 path: faithful to the module's numerics.
    y = jax.block_until_ready(downsample_conv3d(x, weight, bias))
    assert y.shape == (N, Cout, D // 2, H // 2, W // 2), y.shape
    assert jnp.allclose(y, y_ref, atol=2e-2, rtol=2e-2), "f32 mismatch vs lax.conv"

    # bf16 compute path (f32 accumulation): the recommended fast path.
    y_bf16 = jax.block_until_ready(
        downsample_conv3d(x, weight, bias, compute_dtype=jnp.bfloat16))
    assert y_bf16.shape == y.shape
    assert jnp.allclose(y_bf16.astype(jnp.float32), y_ref, atol=1e-1, rtol=1e-1), \
        "bf16 mismatch vs lax.conv"

    print("KERNEL_OK")
</pallas_src>

<mosaic_0001>
module attributes {stable_mosaic.version = 11 : i64} {
  func.func @_downsample_kernel(%arg0: i32, %arg1: i32, %arg2: i32, %arg3: memref<1x1x18x8x12xf32, #tpu.memory_space<vmem>>, %arg4: memref<3x36x128xf32, #tpu.memory_space<vmem>>, %arg5: memref<1x128xf32, #tpu.memory_space<vmem>>, %arg6: memref<1x1x64x128xf32, #tpu.memory_space<vmem>>, %arg7: memref<64x128xf32, #tpu.memory_space<vmem>>) attributes {dimension_semantics = [#tpu.dimension_semantics<parallel>, #tpu.dimension_semantics<parallel>, #tpu.dimension_semantics<arbitrary>], iteration_bounds = array<i64: 2, 8, 3>, scalar_prefetch = 0 : i64, scratch_operands = 1 : i64, tpu.core_type = #tpu.core_type<tc>, window_params = [{transform_indices = @transform_0, window_bounds = array<i64: 1, 1, 18, 8, 12>}, {pipeline_mode = #tpu.pipeline_mode<synchronous>, transform_indices = @transform_1, window_bounds = array<i64: 3, 36, 128>}, {pipeline_mode = #tpu.pipeline_mode<synchronous>, transform_indices = @transform_2, window_bounds = array<i64: 1, 128>}, {transform_indices = @transform_3, window_bounds = array<i64: 1, 1, 64, 128>}]} {
    %c0_i32 = arith.constant 0 : i32
    %0 = arith.cmpi eq, %arg2, %c0_i32 : i32
    %1 = arith.extui %0 : i1 to i32
    %c0_i32_0 = arith.constant 0 : i32
    %2 = arith.cmpi ne, %1, %c0_i32_0 : i32
    scf.if %2 {
      %c0_12 = arith.constant 0 : index
      %c0_13 = arith.constant 0 : index
      %27 = vector.load %arg5[%c0_12, %c0_13] : memref<1x128xf32, #tpu.memory_space<vmem>>, vector<1x128xf32>
      %28 = vector.shape_cast %27 : vector<1x128xf32> to vector<1x128xf32>
      %29 = vector.broadcast %28 : vector<1x128xf32> to vector<64x128xf32>
      %c0_14 = arith.constant 0 : index
      %c0_15 = arith.constant 0 : index
      %30 = vector.load %arg7[%c0_14, %c0_15] : memref<64x128xf32, #tpu.memory_space<vmem>>, vector<64x128xf32>
      tpu.vector_store %arg7[%c0_14, %c0_15], %29 {strides = array<i32>} : memref<64x128xf32, #tpu.memory_space<vmem>>, vector<64x128xf32>,
    } else {
    }
    %c0 = arith.constant 0 : index
    %c0_1 = arith.constant 0 : index
    %c0_2 = arith.constant 0 : index
    %c0_3 = arith.constant 0 : index
    %c0_4 = arith.constant 0 : index
    %3 = vector.load %arg3[%c0, %c0_1, %c0_2, %c0_3, %c0_4] : memref<1x1x18x8x12xf32, #tpu.memory_space<vmem>>, vector<1x1x18x8x12xf32>
    %4 = vector.shape_cast %3 : vector<1x1x18x8x12xf32> to vector<18x8x12xf32>
    %5 = vector.extract_strided_slice %4 {offsets = [0, 0, 0], sizes = [16, 8, 12], strides = [1, 1, 1]} : vector<18x8x12xf32> to vector<16x8x12xf32>
    %6 = vector.shape_cast %5 : vector<16x8x12xf32> to vector<8x2x8x12xf32>
    %7 = vector.extract_strided_slice %4 {offsets = [1, 0, 0], sizes = [16, 8, 12], strides = [1, 1, 1]} : vector<18x8x12xf32> to vector<16x8x12xf32>
    %8 = vector.shape_cast %7 : vector<16x8x12xf32> to vector<8x2x8x12xf32>
    %9 = vector.extract_strided_slice %6 {offsets = [0, 0, 0, 0], sizes = [8, 1, 8, 12], strides = [1, 1, 1, 1]} : vector<8x2x8x12xf32> to vector<8x1x8x12xf32>
    %10 = vector.shape_cast %9 : vector<8x1x8x12xf32> to vector<8x8x12xf32>
    %11 = vector.extract_strided_slice %6 {offsets = [0, 1, 0, 0], sizes = [8, 1, 8, 12], strides = [1, 1, 1, 1]} : vector<8x2x8x12xf32> to vector<8x1x8x12xf32>
    %12 = vector.shape_cast %11 : vector<8x1x8x12xf32> to vector<8x8x12xf32>
    %13 = vector.extract_strided_slice %8 {offsets = [0, 1, 0, 0], sizes = [8, 1, 8, 12], strides = [1, 1, 1, 1]} : vector<8x2x8x12xf32> to vector<8x1x8x12xf32>
    %14 = vector.shape_cast %13 : vector<8x1x8x12xf32> to vector<8x8x12xf32>
    %15 = tpu.concatenate %10, %12, %14 in 2 : vector<8x8x12xf32>, vector<8x8x12xf32>, vector<8x8x12xf32> -> vector<8x8x36xf32>
    %c0_5 = arith.constant 0 : index
    %c0_6 = arith.constant 0 : index
    %16 = vector.load %arg7[%c0_5, %c0_6] : memref<64x128xf32, #tpu.memory_space<vmem>>, vector<64x128xf32>
    %17 = vector.shape_cast %15 : vector<8x8x36xf32> to vector<64x36xf32>
    %18 = arith.index_cast %arg2 : i32 to index
    %c0_7 = arith.constant 0 : index
    %c0_8 = arith.constant 0 : index
    %19 = vector.load %arg4[%18, %c0_7, %c0_8] : memref<3x36x128xf32, #tpu.memory_space<vmem>>, vector<1x36x128xf32>
    %20 = vector.shape_cast %19 : vector<1x36x128xf32> to vector<36x128xf32>
    %cst = arith.constant dense<0.000000e+00> : vector<64x128xf32>
    %21 = tpu.matmul %17, %20, %cst {dimension_numbers = #tpu.dot_dimension_numbers<[1], [0], [0], [1], [0, 0, 1, 1], [], []>} : vector<64x36xf32>, vector<36x128xf32>, vector<64x128xf32> -> vector<64x128xf32>
    %22 = arith.addf %16, %21 : vector<64x128xf32>
    %c0_9 = arith.constant 0 : index
    %c0_10 = arith.constant 0 : index
    %23 = vector.load %arg7[%c0_9, %c0_10] : memref<64x128xf32, #tpu.memory_space<vmem>>, vector<64x128xf32>
    tpu.vector_store %arg7[%c0_9, %c0_10], %22 {strides = array<i32>} : memref<64x128xf32, #tpu.memory_space<vmem>>, vector<64x128xf32>,
    %c2_i32 = arith.constant 2 : i32
    %24 = arith.cmpi eq, %arg2, %c2_i32 : i32
    %25 = arith.extui %24 : i1 to i32
    %c0_i32_11 = arith.constant 0 : i32
    %26 = arith.cmpi ne, %25, %c0_i32_11 : i32
    scf.if %26 {
      %c0_12 = arith.constant 0 : index
      %c0_13 = arith.constant 0 : index
      %27 = vector.load %arg7[%c0_12, %c0_13] : memref<64x128xf32, #tpu.memory_space<vmem>>, vector<64x128xf32>
      %c0_14 = arith.constant 0 : index
      %c0_15 = arith.constant 0 : index
      %c0_16 = arith.constant 0 : index
      %c0_17 = arith.constant 0 : index
      %28 = vector.load %arg6[%c0_14, %c0_15, %c0_16, %c0_17] : memref<1x1x64x128xf32, #tpu.memory_space<vmem>>, vector<1x1x64x128xf32>
      %29 = vector.shape_cast %28 : vector<1x1x64x128xf32> to vector<64x128xf32>
      %30 = vector.shape_cast %27 : vector<64x128xf32> to vector<1x1x64x128xf32>
      tpu.vector_store %arg6[%c0_14, %c0_15, %c0_16, %c0_17], %30 {strides = array<i32>} : memref<1x1x64x128xf32, #tpu.memory_space<vmem>>, vector<1x1x64x128xf32>,
    } else {
    }
    return
  }
  func.func @transform_0(%arg0: i32, %arg1: i32, %arg2: i32) -> (i32, i32, i32, i32, i32) {
    %c2_i32 = arith.constant 2 : i32
    %0 = arith.muli %c2_i32, %arg1 : i32
    %1 = arith.addi %0, %arg2 : i32
    %c0_i32 = arith.constant 0 : i32
    %c0_i32_0 = arith.constant 0 : i32
    %c0_i32_1 = arith.constant 0 : i32
    %c0_i32_2 = arith.constant 0 : i32
    return %arg0, %1, %c0_i32, %c0_i32_0, %c0_i32_1 : i32, i32, i32, i32, i32
  }
  func.func @transform_1(%arg0: i32, %arg1: i32, %arg2: i32) -> (i32, i32, i32) {
    %c0_i32 = arith.constant 0 : i32
    %c0_i32_0 = arith.constant 0 : i32
    %c0_i32_1 = arith.constant 0 : i32
    %c0_i32_2 = arith.constant 0 : i32
    return %c0_i32, %c0_i32_0, %c0_i32_1 : i32, i32, i32
  }
  func.func @transform_2(%arg0: i32, %arg1: i32, %arg2: i32) -> (i32, i32) {
    %c0_i32 = arith.constant 0 : i32
    %c0_i32_0 = arith.constant 0 : i32
    %c0_i32_1 = arith.constant 0 : i32
    return %c0_i32, %c0_i32_0 : i32, i32
  }
  func.func @transform_3(%arg0: i32, %arg1: i32, %arg2: i32) -> (i32, i32, i32, i32) {
    %c0_i32 = arith.constant 0 : i32
    %c0_i32_0 = arith.constant 0 : i32
    %c0_i32_1 = arith.constant 0 : i32
    return %arg0, %arg1, %c0_i32, %c0_i32_0 : i32, i32, i32, i32
  }
}

module attributes {stable_mosaic.version = 11 : i64} {
  func.func @_downsample_kernel(%arg0: i32, %arg1: i32, %arg2: i32, %arg3: memref<1x1x18x8x12xf32, #tpu.memory_space<vmem>>, %arg4: memref<3x36x128xf32, #tpu.memory_space<vmem>>, %arg5: memref<1x128xf32, #tpu.memory_space<vmem>>, %arg6: memref<1x1x64x128xf32, #tpu.memory_space<vmem>>, %arg7: memref<64x128xf32, #tpu.memory_space<vmem>>) attributes {dimension_semantics = [#tpu.dimension_semantics<parallel>, #tpu.dimension_semantics<parallel>, #tpu.dimension_semantics<arbitrary>], iteration_bounds = array<i64: 2, 8, 3>, scalar_prefetch = 0 : i64, scratch_operands = 1 : i64, tpu.core_type = #tpu.core_type<tc>, window_params = [{transform_indices = @transform_0, window_bounds = array<i64: 1, 1, 18, 8, 12>}, {pipeline_mode = #tpu.pipeline_mode<synchronous>, transform_indices = @transform_1, window_bounds = array<i64: 3, 36, 128>}, {pipeline_mode = #tpu.pipeline_mode<synchronous>, transform_indices = @transform_2, window_bounds = array<i64: 1, 128>}, {transform_indices = @transform_3, window_bounds = array<i64: 1, 1, 64, 128>}]} {
    %c0_i32 = arith.constant 0 : i32
    %0 = arith.cmpi eq, %arg2, %c0_i32 : i32
    %1 = arith.extui %0 : i1 to i32
    %c0_i32_0 = arith.constant 0 : i32
    %2 = arith.cmpi ne, %1, %c0_i32_0 : i32
    scf.if %2 {
      %c0_12 = arith.constant 0 : index
      %c0_13 = arith.constant 0 : index
      %27 = vector.load %arg5[%c0_12, %c0_13] : memref<1x128xf32, #tpu.memory_space<vmem>>, vector<1x128xf32>
      %28 = vector.shape_cast %27 : vector<1x128xf32> to vector<1x128xf32>
      %29 = vector.broadcast %28 : vector<1x128xf32> to vector<64x128xf32>
      %c0_14 = arith.constant 0 : index
      %c0_15 = arith.constant 0 : index
      %30 = vector.load %arg7[%c0_14, %c0_15] : memref<64x128xf32, #tpu.memory_space<vmem>>, vector<64x128xf32>
      tpu.vector_store %arg7[%c0_14, %c0_15], %29 {strides = array<i32>} : memref<64x128xf32, #tpu.memory_space<vmem>>, vector<64x128xf32>,
    } else {
    }
    %c0 = arith.constant 0 : index
    %c0_1 = arith.constant 0 : index
    %c0_2 = arith.constant 0 : index
    %c0_3 = arith.constant 0 : index
    %c0_4 = arith.constant 0 : index
    %3 = vector.load %arg3[%c0, %c0_1, %c0_2, %c0_3, %c0_4] : memref<1x1x18x8x12xf32, #tpu.memory_space<vmem>>, vector<1x1x18x8x12xf32>
    %4 = vector.shape_cast %3 : vector<1x1x18x8x12xf32> to vector<18x8x12xf32>
    %5 = vector.extract_strided_slice %4 {offsets = [0, 0, 0], sizes = [16, 8, 12], strides = [1, 1, 1]} : vector<18x8x12xf32> to vector<16x8x12xf32>
    %6 = vector.shape_cast %5 : vector<16x8x12xf32> to vector<8x2x8x12xf32>
    %7 = vector.extract_strided_slice %4 {offsets = [1, 0, 0], sizes = [16, 8, 12], strides = [1, 1, 1]} : vector<18x8x12xf32> to vector<16x8x12xf32>
    %8 = vector.shape_cast %7 : vector<16x8x12xf32> to vector<8x2x8x12xf32>
    %9 = vector.extract_strided_slice %6 {offsets = [0, 0, 0, 0], sizes = [8, 1, 8, 12], strides = [1, 1, 1, 1]} : vector<8x2x8x12xf32> to vector<8x1x8x12xf32>
    %10 = vector.shape_cast %9 : vector<8x1x8x12xf32> to vector<8x8x12xf32>
    %11 = vector.extract_strided_slice %6 {offsets = [0, 1, 0, 0], sizes = [8, 1, 8, 12], strides = [1, 1, 1, 1]} : vector<8x2x8x12xf32> to vector<8x1x8x12xf32>
    %12 = vector.shape_cast %11 : vector<8x1x8x12xf32> to vector<8x8x12xf32>
    %13 = vector.extract_strided_slice %8 {offsets = [0, 1, 0, 0], sizes = [8, 1, 8, 12], strides = [1, 1, 1, 1]} : vector<8x2x8x12xf32> to vector<8x1x8x12xf32>
    %14 = vector.shape_cast %13 : vector<8x1x8x12xf32> to vector<8x8x12xf32>
    %15 = tpu.concatenate %10, %12, %14 in 2 : vector<8x8x12xf32>, vector<8x8x12xf32>, vector<8x8x12xf32> -> vector<8x8x36xf32>
    %c0_5 = arith.constant 0 : index
    %c0_6 = arith.constant 0 : index
    %16 = vector.load %arg7[%c0_5, %c0_6] : memref<64x128xf32, #tpu.memory_space<vmem>>, vector<64x128xf32>
    %17 = vector.shape_cast %15 : vector<8x8x36xf32> to vector<64x36xf32>
    %18 = arith.index_cast %arg2 : i32 to index
    %c0_7 = arith.constant 0 : index
    %c0_8 = arith.constant 0 : index
    %19 = vector.load %arg4[%18, %c0_7, %c0_8] : memref<3x36x128xf32, #tpu.memory_space<vmem>>, vector<1x36x128xf32>
    %20 = vector.shape_cast %19 : vector<1x36x128xf32> to vector<36x128xf32>
    %cst = arith.constant dense<0.000000e+00> : vector<64x128xf32>
    %21 = tpu.matmul %17, %20, %cst {dimension_numbers = #tpu.dot_dimension_numbers<[1], [0], [0], [1], [0, 0, 1, 1], [], []>} : vector<64x36xf32>, vector<36x128xf32>, vector<64x128xf32> -> vector<64x128xf32>
    %22 = arith.addf %16, %21 : vector<64x128xf32>
    %c0_9 = arith.constant 0 : index
    %c0_10 = arith.constant 0 : index
    %23 = vector.load %arg7[%c0_9, %c0_10] : memref<64x128xf32, #tpu.memory_space<vmem>>, vector<64x128xf32>
    tpu.vector_store %arg7[%c0_9, %c0_10], %22 {strides = array<i32>} : memref<64x128xf32, #tpu.memory_space<vmem>>, vector<64x128xf32>,
    %c2_i32 = arith.constant 2 : i32
    %24 = arith.cmpi eq, %arg2, %c2_i32 : i32
    %25 = arith.extui %24 : i1 to i32
    %c0_i32_11 = arith.constant 0 : i32
    %26 = arith.cmpi ne, %25, %c0_i32_11 : i32
    scf.if %26 {
      %c0_12 = arith.constant 0 : index
      %c0_13 = arith.constant 0 : index
      %27 = vector.load %arg7[%c0_12, %c0_13] : memref<64x128xf32, #tpu.memory_space<vmem>>, vector<64x128xf32>
      %c0_14 = arith.constant 0 : index
      %c0_15 = arith.constant 0 : index
      %c0_16 = arith.constant 0 : index
      %c0_17 = arith.constant 0 : index
      %28 = vector.load %arg6[%c0_14, %c0_15, %c0_16, %c0_17] : memref<1x1x64x128xf32, #tpu.memory_space<vmem>>, vector<1x1x64x128xf32>
      %29 = vector.shape_cast %28 : vector<1x1x64x128xf32> to vector<64x128xf32>
      %30 = vector.shape_cast %27 : vector<64x128xf32> to vector<1x1x64x128xf32>
      tpu.vector_store %arg6[%c0_14, %c0_15, %c0_16, %c0_17], %30 {strides = array<i32>} : memref<1x1x64x128xf32, #tpu.memory_space<vmem>>, vector<1x1x64x128xf32>,
    } else {
    }
    return
  }
  func.func @transform_0(%arg0: i32, %arg1: i32, %arg2: i32) -> (i32, i32, i32, i32, i32) {
    %c2_i32 = arith.constant 2 : i32
    %0 = arith.muli %c2_i32, %arg1 : i32
    %1 = arith.addi %0, %arg2 : i32
    %c0_i32 = arith.constant 0 : i32
    %c0_i32_0 = arith.constant 0 : i32
    %c0_i32_1 = arith.constant 0 : i32
    %c0_i32_2 = arith.constant 0 : i32
    return %arg0, %1, %c0_i32, %c0_i32_0, %c0_i32_1 : i32, i32, i32, i32, i32
  }
  func.func @transform_1(%arg0: i32, %arg1: i32, %arg2: i32) -> (i32, i32, i32) {
    %c0_i32 = arith.constant 0 : i32
    %c0_i32_0 = arith.constant 0 : i32
    %c0_i32_1 = arith.constant 0 : i32
    %c0_i32_2 = arith.constant 0 : i32
    return %c0_i32, %c0_i32_0, %c0_i32_1 : i32, i32, i32
  }
  func.func @transform_2(%arg0: i32, %arg1: i32, %arg2: i32) -> (i32, i32) {
    %c0_i32 = arith.constant 0 : i32
    %c0_i32_0 = arith.constant 0 : i32
    %c0_i32_1 = arith.constant 0 : i32
    return %c0_i32, %c0_i32_0 : i32, i32
  }
  func.func @transform_3(%arg0: i32, %arg1: i32, %arg2: i32) -> (i32, i32, i32, i32) {
    %c0_i32 = arith.constant 0 : i32
    %c0_i32_0 = arith.constant 0 : i32
    %c0_i32_1 = arith.constant 0 : i32
    return %arg0, %arg1, %c0_i32, %c0_i32_0 : i32, i32, i32, i32
  }
}

</mosaic_0001>

<llo_original>
// kernel: tpu_custom_call.1
$region0: #{tpu_custom_call.1}
  #allocation0 [shape = 'u32[]', space=smem, size = 0x4, offset = 0x4, fixed_abs, tag = 'smem constant byte address 0x4 - core index']
  #allocation1 [shape = 'u32[144,128]{1,0:T(1,128)}', space=vmem, size = 0x12000, scoped, tag = 'internal scratch']
  #allocation2 [shape = 'f32[64,128]{1,0:T(8,128)}', space=vmem, size = 0x8000, scoped, tag = 'scratch operand']
  %s0 = inlined_call_operand.vmem [shape: f32[2,18,18,8,12], index: 0, kind: input, shape index: {}]
  %s1 = inlined_call_operand.vmem [shape: f32[3,36,128], index: 1, kind: input, shape index: {}]
  %s2 = inlined_call_operand.vmem [shape: f32[1,128], index: 2, kind: input, shape index: {}]
  %s3 = inlined_call_operand.hbm [shape: f32[2,8,64,128], index: 3, kind: output, shape index: {}]
  %s4 = sld [smem:[#allocation0]]
  $region53: #{tpu_custom_call.1} parent=0
    _
  %s6 = ssub.s32 1, %s4
  %s7 = scalar_select 0, %s6, %s4
  $region1: #{tpu_custom_call.1} parent=0
    #allocation3 [shape = 'u8[65536]{0}', space=vmem, size = 0x10000, scoped, tag = 'output window, operand 0']
    #allocation4 [shape = 's32[2]{0}', space=sflag, size = 0x8, scoped, tag = 'scoped memory for tpu_custom_call.1']
    %8 = vsyncpa [#allocation4], 0
    %s9 = scalar_lea.sflag [#allocation4], 1
    %10 = vsyncpa %s9, 0
    loop: start=0, step=1, limit=50
    $region2: #{tpu_custom_call.1} parent=1 // loop_pre_header
      _
    $region3: #{tpu_custom_call.1} parent=1 // loop_header
      %s12 = sphi 0, %s16
      %p13 = scmp.ge.s32.totalorder %s12, 50
      %s19 = sphi 0, %s38
      %s20 = sphi 0, %s34
      %s21 = sphi 0, %s30
      %s22 = sphi 0, %s19
      %s23 = sphi 0, %s20
      %s24 = sphi 0, %s21
      %s25 = sphi 0, %s22
      %s26 = sphi 0, %s23
      %s27 = sphi 0, %s24
      %s47 = sphi 0, %s49
      %s50 = sphi 0, %s47
      %s51 = sphi 0, %s50
      %s67 = sphi 0, %s51
      %s71 = sphi 0, %s71
      %s73 = sphi 0, %s71
      %s74 = sphi 0, %s73
      %s88 = sphi 0, %s74
      %s92 = sphi 0, %s92
      %s94 = sphi 0, %s92
      %s95 = sphi 0, %s94
      %s109 = sphi 0, %s95
      %s117 = sphi 0, %s119
      %s120 = sphi 0, %s117
      %s121 = sphi 0, %s120
      %s137 = sphi 0, %s121
    $region4: #{tpu_custom_call.1} parent=1 // loop_header_branch
      %15 = sbr.rel (%p13) target = $region8
    $region5: #{tpu_custom_call.1} parent=1 // loop_body
      %s17 = ssub.s32 %s12, 1
      %s18 = ssub.s32 %s12, 2
      %s28 = sadd.s32 1, %s21
      %p29 = scmp.ge.s32.totalorder %s28, 3
      %s30 = scalar_select %p29, 0, %s28
      %s31 = sadd.s32 1, %s20
      %s32 = scalar_select %p29, %s31, %s20
      %p33 = scmp.ge.s32.totalorder %s32, 8
      %s34 = scalar_select %p33, 0, %s32
      %s35 = sadd.s32 1, %s19
      %s36 = scalar_select %p33, %s35, %s19
      %p37 = scmp.ge.s32.totalorder %s36, 2
      %s38 = scalar_select %p37, 0, %s36
      %s39 = smul.u32 %s20, 2
      %s40 = sadd.s32 %s39, %s21
      %s41 = smul.u32 %s34, 2
      %s42 = sadd.s32 %s41, %s30
      %s43 = ssub.s32 %s19, %s38
      %s44 = ssub.s32 %s40, %s42
      %s45 = sor.u32 %s43, %s44
      %p46 = scmp.eq.s32.totalorder %s45, 0
      %s48 = sadd.s32 %s47, 1
      %s49 = scalar_select %p46, %s47, %s48
      %p52 = pneg %p46
      %p53 = scmp.eq.s32.totalorder %s12, 47
      %p54 = por %p52, %p53
      %p55 = scmp.ne.s32.totalorder %s47, %s50
      %p56 = scmp.eq.s32.totalorder %s12, 0
      %p57 = por %p55, %p56
      %p58 = scmp.ne.s32.totalorder %s47, %s50
      %p59 = scmp.eq.s32.totalorder %s17, 47
      %p60 = por %p58, %p59
      %p61 = scmp.ne.s32.totalorder %s50, %s51
      %p62 = scmp.eq.s32.totalorder %s17, 0
      %p63 = por %p61, %p62
      %p64 = scmp.ne.s32.totalorder %s50, %s51
      %p65 = scmp.eq.s32.totalorder %s18, 47
      %p66 = por %p64, %p65
      %p68 = scmp.ne.s32.totalorder %s51, %s67
      %p69 = scmp.eq.s32.totalorder %s18, 0
      %p70 = por %p68, %p69
      %s72 = sadd.s32 %s71, 1
      %p75 = scmp.eq.s32.totalorder %s12, 47
      %p76 = scmp.ne.s32.totalorder %s71, %s73
      %p77 = scmp.eq.s32.totalorder %s12, 0
      %p78 = por %p76, %p77
      %p79 = scmp.ne.s32.totalorder %s71, %s73
      %p80 = scmp.eq.s32.totalorder %s17, 47
      %p81 = por %p79, %p80
      %p82 = scmp.ne.s32.totalorder %s73, %s74
      %p83 = scmp.eq.s32.totalorder %s17, 0
      %p84 = por %p82, %p83
      %p85 = scmp.ne.s32.totalorder %s73, %s74
      %p86 = scmp.eq.s32.totalorder %s18, 47
      %p87 = por %p85, %p86
      %p89 = scmp.ne.s32.totalorder %s74, %s88
      %p90 = scmp.eq.s32.totalorder %s18, 0
      %p91 = por %p89, %p90
      %s93 = sadd.s32 %s92, 1
      %p96 = scmp.eq.s32.totalorder %s12, 47
      %p97 = scmp.ne.s32.totalorder %s92, %s94
      %p98 = scmp.eq.s32.totalorder %s12, 0
      %p99 = por %p97, %p98
      %p100 = scmp.ne.s32.totalorder %s92, %s94
      %p101 = scmp.eq.s32.totalorder %s17, 47
      %p102 = por %p100, %p101
      %p103 = scmp.ne.s32.totalorder %s94, %s95
      %p104 = scmp.eq.s32.totalorder %s17, 0
      %p105 = por %p103, %p104
      %p106 = scmp.ne.s32.totalorder %s94, %s95
      %p107 = scmp.eq.s32.totalorder %s18, 47
      %p108 = por %p106, %p107
      %p110 = scmp.ne.s32.totalorder %s95, %s109
      %p111 = scmp.eq.s32.totalorder %s18, 0
      %p112 = por %p110, %p111
      %s113 = ssub.s32 %s19, %s38
      %s114 = ssub.s32 %s20, %s34
      %s115 = sor.u32 %s113, %s114
      %p116 = scmp.eq.s32.totalorder %s115, 0
      %s118 = sadd.s32 %s117, 1
      %s119 = scalar_select %p116, %s117, %s118
      %p122 = pneg %p116
      %p123 = scmp.eq.s32.totalorder %s12, 47
      %p124 = por %p122, %p123
      %p125 = scmp.ne.s32.totalorder %s117, %s120
      %p126 = scmp.eq.s32.totalorder %s12, 0
      %p127 = por %p125, %p126
      %p128 = scmp.ne.s32.totalorder %s117, %s120
      %p129 = scmp.eq.s32.totalorder %s17, 47
      %p130 = por %p128, %p129
      %p131 = scmp.ne.s32.totalorder %s120, %s121
      %p132 = scmp.eq.s32.totalorder %s17, 0
      %p133 = por %p131, %p132
      %p134 = scmp.ne.s32.totalorder %s120, %s121
      %p135 = scmp.eq.s32.totalorder %s18, 47
      %p136 = por %p134, %p135
      %p138 = scmp.ne.s32.totalorder %s121, %s137
      %p139 = scmp.eq.s32.totalorder %s18, 0
      %p140 = por %p138, %p139
      %p141 = scmp.le.s32.totalorder 1, %s12
      %p142 = scmp.lt.s32.totalorder %s12, 49
      %p143 = pnand %p141, %p142
      %p144 = pneg %p143
      // Predicated region
      $region9: #{tpu_custom_call.1} parent=5 // pred_check
        _
      $region10: #{tpu_custom_call.1} parent=5 // pred_check_branch
        %146 = sbr.rel (%p143) target = $region12
      $region11: #{tpu_custom_call.1} parent=5 // pred_region
        %s147 = ssub.s32 %s12, 1
        // Predicated region
        $region13: #{tpu_custom_call.1} parent=11 // pred_check
          %p148 = pneg %p84
        $region14: #{tpu_custom_call.1} parent=11 // pred_check_branch
          %150 = sbr.rel (%p148) target = $region16
        $region15: #{tpu_custom_call.1} parent=11 // pred_region
          _
        $region16: #{tpu_custom_call.1} parent=11 // pred_fallthru
          _
        // Predicated region
        $region17: #{tpu_custom_call.1} parent=11 // pred_check
          %p151 = pneg %p105
        $region18: #{tpu_custom_call.1} parent=11 // pred_check_branch
          %153 = sbr.rel (%p151) target = $region20
        $region19: #{tpu_custom_call.1} parent=11 // pred_region
          _
        $region20: #{tpu_custom_call.1} parent=11 // pred_fallthru
          _
      $region12: #{tpu_custom_call.1} parent=5 // pred_fallthru
        _
      %p154 = scmp.lt.s32.totalorder %s12, 48
      // Predicated region
      $region21: #{tpu_custom_call.1} parent=5 // pred_check
        %p155 = pneg %p154
      $region22: #{tpu_custom_call.1} parent=5 // pred_check_branch
        %157 = sbr.rel (%p155) target = $region24
      $region23: #{tpu_custom_call.1} parent=5 // pred_region
        // Predicated region
        $region25: #{tpu_custom_call.1} parent=23 // pred_check
          %p158 = pneg %p57
        $region26: #{tpu_custom_call.1} parent=23 // pred_check_branch
          %160 = sbr.rel (%p158) target = $region28
        $region27: #{tpu_custom_call.1} parent=23 // pred_region
          %s161 = smul.u32 %s20, 2
          %s162 = sadd.s32 %s161, %s21
          %p163 = scmp.lt.s32.totalorder %s19, 1
          %s164 = scalar_select %p163, %s19, 1
          %p165 = scmp.lt.s32.totalorder %s162, 17
          %s166 = scalar_select %p165, %s162, 17
          %s167 = smul.addr %s166, 18
          %s168 = smul.addr %s164, 324
          %s169 = sadd.s32 %s167, %s168
          %s170 = smul.addr %s169, 8
          %s171 = scalar_lea.vmem %s0, %s170
          %s172 = smul.u32 %s20, 2
          %s173 = sadd.s32 %s172, %s21
        $region28: #{tpu_custom_call.1} parent=23 // pred_fallthru
          _
      $region24: #{tpu_custom_call.1} parent=5 // pred_fallthru
        _
      %p174 = scmp.le.s32.totalorder 1, %s12
      %p175 = scmp.lt.s32.totalorder %s12, 49
      %p176 = pnand %p174, %p175
      %p177 = pneg %p176
      // Predicated region
      $region29: #{tpu_custom_call.1} parent=5 // pred_check
        _
      $region30: #{tpu_custom_call.1} parent=5 // pred_check_branch
        %179 = sbr.rel (%p176) target = $region32
      $region31: #{tpu_custom_call.1} parent=5 // pred_region
        %s180 = ssub.s32 %s12, 1
        %s181 = smul.u32 %s23, 2
        %s182 = sadd.s32 %s181, %s24
        %p183 = scmp.lt.s32.totalorder %s22, 1
        %s184 = scalar_select %p183, %s22, 1
        %p185 = scmp.lt.s32.totalorder %s182, 17
        %s186 = scalar_select %p185, %s182, 17
        %s187 = smul.addr %s186, 18
        %s188 = smul.addr %s184, 324
        %s189 = sadd.s32 %s187, %s188
        %s190 = smul.addr %s189, 8
        %s191 = scalar_lea.vmem %s0, %s190
        %p192 = pneg %p63
        %p193 = pneg %p60
        %p194 = pneg %p84
        %p195 = pneg %p81
        %p196 = pneg %p105
        %p197 = pneg %p102
        %p198 = pneg %p133
        %p199 = pneg %p130
        %s200 = sand.u32 %s120, 1
        %s201 = scalar_lea.sflag [#allocation4], %s200
        %s202 = sand.u32 %s120, 1
        %s203 = smul.addr %s202, 64
        %s204 = scalar_lea.vmem [#allocation3], %s203
        %s205 = smul.u32 %s23, 2
        %s206 = sadd.s32 %s205, %s24
        %p207 = scmp.lt.s32.totalorder %s22, 1
        %s208 = scalar_select %p207, %s22, 1
        %p209 = scmp.lt.s32.totalorder %s206, 17
        %s210 = scalar_select %p209, %s206, 17
        %s211 = smul.addr %s210, 18
        %s212 = smul.addr %s208, 324
        %s213 = sadd.s32 %s211, %s212
        %s214 = smul.addr %s213, 8
        %s215 = scalar_lea.vmem %s0, %s214
        %s216 = smul.u32 %s23, 2
        %s217 = sadd.s32 %s216, %s24
        %p218 = scmp.eq.s32.totalorder %s24, 0
        // Predicated region
        $region33: #{tpu_custom_call.1} parent=31 // pred_check
          %p219 = pneg %p218
        $region34: #{tpu_custom_call.1} parent=31 // pred_check_branch
          %221 = sbr.rel (%p219) target = $region36
        $region35: #{tpu_custom_call.1} parent=31 // pred_region
          %v222 = vld [vmem:[%s2] sm:$0x1]
          %v224 = vlaneseq
          %v225 = vshrl.u32 %v224, 7
          %v226 = vsub.s32 0, %v225
          %v227 = vrot.slane %v222, %v226
          %229 = vst [vmem:[#allocation2] sm:$0xff] %v227
          %230 = vst [vmem:[#allocation2 + $0x8] sm:$0xff] %v227
          %231 = vst [vmem:[#allocation2 + $0x10] sm:$0xff] %v227
          %232 = vst [vmem:[#allocation2 + $0x18] sm:$0xff] %v227
          %233 = vst [vmem:[#allocation2 + $0x20] sm:$0xff] %v227
          %234 = vst [vmem:[#allocation2 + $0x28] sm:$0xff] %v227
          %235 = vst [vmem:[#allocation2 + $0x30] sm:$0xff] %v227
          %236 = vst [vmem:[#allocation2 + $0x38] sm:$0xff] %v227
        $region36: #{tpu_custom_call.1} parent=31 // pred_fallthru
          _
        %v237 = vld [vmem:[%s215] sm:$0xff]
        %v238 = vld [vmem:[%s215 + $0x8] sm:$0xff]
        %v239 = vld [vmem:[%s215 + $0x10] sm:$0xff]
        %v240 = vld [vmem:[%s215 + $0x18] sm:$0xff]
        %v241 = vld [vmem:[%s215 + $0x20] sm:$0xff]
        %v242 = vld [vmem:[%s215 + $0x28] sm:$0xff]
        %v243 = vld [vmem:[%s215 + $0x30] sm:$0xff]
        %v244 = vld [vmem:[%s215 + $0x38] sm:$0xff]
        %v245 = vld [vmem:[%s215 + $0x40] sm:$0xff]
        %v246 = vld [vmem:[%s215 + $0x48] sm:$0xff]
        %v247 = vld [vmem:[%s215 + $0x50] sm:$0xff]
        %v248 = vld [vmem:[%s215 + $0x58] sm:$0xff]
        %v249 = vld [vmem:[%s215 + $0x60] sm:$0xff]
        %v250 = vld [vmem:[%s215 + $0x68] sm:$0xff]
        %v251 = vld [vmem:[%s215 + $0x70] sm:$0xff]
        %v252 = vld [vmem:[%s215 + $0x78] sm:$0xff]
        %v253 = vld [vmem:[%s215 + $0x80] sm:$0xff]
        %262 = vrot.lane.b32.xlu0 %v238, 12
        %v263 = vpop.permute.xlu0 %262
        %264 = vrot.lane.b32.xlu0 %v240, 12
        %v265 = vpop.permute.xlu0 %264
        %266 = vrot.lane.b32.xlu0 %v242, 12
        %v267 = vpop.permute.xlu0 %266
        %268 = vrot.lane.b32.xlu0 %v244, 12
        %v269 = vpop.permute.xlu0 %268
        %270 = vrot.lane.b32.xlu0 %v246, 12
        %v271 = vpop.permute.xlu0 %270
        %272 = vrot.lane.b32.xlu0 %v248, 12
        %v273 = vpop.permute.xlu0 %272
        %274 = vrot.lane.b32.xlu0 %v250, 12
        %v275 = vpop.permute.xlu0 %274
        %276 = vrot.lane.b32.xlu0 %v252, 12
        %v277 = vpop.permute.xlu0 %276
        %294 = vrot.lane.b32.xlu0 %v239, 24
        %v295 = vpop.permute.xlu0 %294
        %296 = vrot.lane.b32.xlu0 %v241, 24
        %v297 = vpop.permute.xlu0 %296
        %298 = vrot.lane.b32.xlu0 %v243, 24
        %v299 = vpop.permute.xlu0 %298
        %300 = vrot.lane.b32.xlu0 %v245, 24
        %v301 = vpop.permute.xlu0 %300
        %302 = vrot.lane.b32.xlu0 %v247, 24
        %v303 = vpop.permute.xlu0 %302
        %304 = vrot.lane.b32.xlu0 %v249, 24
        %v305 = vpop.permute.xlu0 %304
        %306 = vrot.lane.b32.xlu0 %v251, 24
        %v307 = vpop.permute.xlu0 %306
        %308 = vrot.lane.b32.xlu0 %v253, 24
        %v309 = vpop.permute.xlu0 %308
        %vm318 = vcmask 97280
        %v319 = vsel %vm318, %v237, %v263
        %v320 = vsel %vm318, %v239, %v265
        %v321 = vsel %vm318, %v241, %v267
        %v322 = vsel %vm318, %v243, %v269
        %v323 = vsel %vm318, %v245, %v271
        %v324 = vsel %vm318, %v247, %v273
        %v325 = vsel %vm318, %v249, %v275
        %v326 = vsel %vm318, %v251, %v277
        %vm327 = vcmask 195584
        %v328 = vsel %vm327, %v319, %v295
        %v329 = vsel %vm327, %v320, %v297
        %v330 = vsel %vm327, %v321, %v299
        %v331 = vsel %vm327, %v322, %v301
        %v332 = vsel %vm327, %v323, %v303
        %v333 = vsel %vm327, %v324, %v305
        %v334 = vsel %vm327, %v325, %v307
        %v335 = vsel %vm327, %v326, %v309
        %v336 = vld [vmem:[#allocation2] sm:$0xff]
        %v337 = vld [vmem:[#allocation2 + $0x8] sm:$0xff]
        %v338 = vld [vmem:[#allocation2 + $0x10] sm:$0xff]
        %v339 = vld [vmem:[#allocation2 + $0x18] sm:$0xff]
        %v340 = vld [vmem:[#allocation2 + $0x20] sm:$0xff]
        %v341 = vld [vmem:[#allocation2 + $0x28] sm:$0xff]
        %v342 = vld [vmem:[#allocation2 + $0x30] sm:$0xff]
        %v343 = vld [vmem:[#allocation2 + $0x38] sm:$0xff]
        %s344 = smul.u32 %s24, 40
        %s345 = scalar_lea.vmem %s1, %s344
        %v346 = vld [vmem:[%s345] sm:$0xff]
        %v347 = vld [vmem:[%s345 + $0x8] sm:$0xff]
        %v348 = vld [vmem:[%s345 + $0x10] sm:$0xff]
        %v349 = vld [vmem:[%s345 + $0x18] sm:$0xff]
        %v350 = vld [vmem:[%s345 + $0x20] sm:$0xf]
        %vm351 = vcmask 293888
        %v353 = vsel %vm351, %v328, 0
        %v356 = vsel %vm351, %v329, 0
        %v359 = vsel %vm351, %v330, 0
        %v362 = vsel %vm351, %v331, 0
        %v365 = vsel %vm351, %v332, 0
        %v368 = vsel %vm351, %v333, 0
        %v371 = vsel %vm351, %v334, 0
        %v374 = vsel %vm351, %v335, 0
        %vm376 = vcmask 1043456
        %v378 = vsel %vm376, %v350, 0
        %380 = vmatprep.subr.mxu0 0.0
        %381 = vmatpush1.msra.mxu0 0.0
        %382 = vmatprep.subr.mxu0 0.0
        %383 = vmatpush1.msra.mxu0 0.0
        %384 = vmatprep.subr.mxu0 0.0
        %385 = vmatpush1.msra.mxu0 0.0
        %386 = vmatprep.subr.mxu0 0.0
        %387 = vmatpush1.msra.mxu0 0.0
        %388 = vmatprep.subr.mxu0 0.0
        %389 = vmatpush1.msra.mxu0 0.0
        %390 = vmatprep.subr.mxu0 0.0
        %391 = vmatpush1.msra.mxu0 0.0
        %392 = vmatprep.subr.mxu0 0.0
        %393 = vmatpush1.msra.mxu0 0.0
        %394 = vmatprep.subr.mxu0 0.0
        %395 = vmatpush1.msra.mxu0 0.0
        %396 = vmatprep.subr.mxu0 0.0
        %397 = vmatpush1.msra.mxu0 0.0
        %398 = vmatprep.subr.mxu0 0.0
        %399 = vmatpush1.msra.mxu0 0.0
        %400 = vmatprep.subr.mxu0 0.0
        %401 = vmatpush1.msra.mxu0 0.0
        %402 = vmatprep.subr.mxu0 0.0
        %403 = vmatpush1.msra.mxu0 %v378
        %404 = vmatprep.subr.mxu0 0.0
        %405 = vmatpush1.msra.mxu0 %v349
        %406 = vmatprep.subr.mxu0 0.0
        %407 = vmatpush1.msra.mxu0 %v348
        %408 = vmatprep.subr.mxu0 0.0
        %409 = vmatpush1.msra.mxu0 %v347
        %410 = vmatprep.subr.mxu0 0.0
        %411 = vmatpush1.msra.mxu0 %v346
        %412 = vmatprep.subr.mxu0 0.0
        %413 = vmatpush2.msra.mxu0 0.0
        %414 = vmatprep.subr.mxu0 0.0
        %415 = vmatpush2.msra.mxu0 0.0
        %416 = vmatprep.subr.mxu0 0.0
        %417 = vmatpush2.msra.mxu0 0.0
        %418 = vmatprep.subr.mxu0 0.0
        %419 = vmatpush2.msra.mxu0 0.0
        %420 = vmatprep.subr.mxu0 0.0
        %421 = vmatpush2.msra.mxu0 0.0
        %422 = vmatprep.subr.mxu0 0.0
        %423 = vmatpush2.msra.mxu0 0.0
        %424 = vmatprep.subr.mxu0 0.0
        %425 = vmatpush2.msra.mxu0 0.0
        %426 = vmatprep.subr.mxu0 0.0
        %427 = vmatpush2.msra.mxu0 0.0
        %428 = vmatprep.subr.mxu0 0.0
        %429 = vmatpush2.msra.mxu0 0.0
        %430 = vmatprep.subr.mxu0 0.0
        %431 = vmatpush2.msra.mxu0 0.0
        %432 = vmatprep.subr.mxu0 0.0
        %433 = vmatpush2.msra.mxu0 0.0
        %434 = vmatprep.subr.mxu0 0.0
        %435 = vmatpush2.msra.mxu0 0.0
        %436 = vmatprep.subr.mxu0 0.0
        %437 = vmatpush2.msra.mxu0 0.0
        %438 = vmatprep.subr.mxu0 0.0
        %439 = vmatpush2.msra.mxu0 0.0
        %440 = vmatprep.subr.mxu0 0.0
        %441 = vmatpush2.msra.mxu0 0.0
        %442 = vmatprep.subr.mxu0 0.0
        %443 = vmatpush2.msra.mxu0 0.0
        %444 = vmatprep.mubr.f32.mxu0 0.0
        %445 = vmatmul.mubr.f32.gmra.mxu0 %v353
        %v446 = vpop.f32.mrf.mxu0
        %v447 = vadd.f32 0.0, %v446
        %v448 = vpop.f32.mrf.mxu0
        %449 = vmatprep.mubr.f32.mxu0 0.0
        %450 = vmatmul.mubr.f32.gmra.mxu0 %v356
        %v451 = vpop.f32.mrf.mxu0
        %v452 = vadd.f32 0.0, %v451
        %v453 = vpop.f32.mrf.mxu0
        %454 = vmatprep.mubr.f32.mxu0 0.0
        %455 = vmatmul.mubr.f32.gmra.mxu0 %v359
        %v456 = vpop.f32.mrf.mxu0
        %v457 = vadd.f32 0.0, %v456
        %v458 = vpop.f32.mrf.mxu0
        %459 = vmatprep.mubr.f32.mxu0 0.0
        %460 = vmatmul.mubr.f32.gmra.mxu0 %v362
        %v461 = vpop.f32.mrf.mxu0
        %v462 = vadd.f32 0.0, %v461
        %v463 = vpop.f32.mrf.mxu0
        %464 = vmatprep.mubr.f32.mxu0 0.0
        %465 = vmatmul.mubr.f32.gmra.mxu0 %v365
        %v466 = vpop.f32.mrf.mxu0
        %v467 = vadd.f32 0.0, %v466
        %v468 = vpop.f32.mrf.mxu0
        %469 = vmatprep.mubr.f32.mxu0 0.0
        %470 = vmatmul.mubr.f32.gmra.mxu0 %v368
        %v471 = vpop.f32.mrf.mxu0
        %v472 = vadd.f32 0.0, %v471
        %v473 = vpop.f32.mrf.mxu0
        %474 = vmatprep.mubr.f32.mxu0 0.0
        %475 = vmatmul.mubr.f32.gmra.mxu0 %v371
        %v476 = vpop.f32.mrf.mxu0
        %v477 = vadd.f32 0.0, %v476
        %v478 = vpop.f32.mrf.mxu0
        %479 = vmatprep.mubr.f32.mxu0 0.0
        %480 = vmatmul.mubr.f32.gmra.mxu0 %v374
        %v481 = vpop.f32.mrf.mxu0
        %v482 = vadd.f32 0.0, %v481
        %v483 = vpop.f32.mrf.mxu0
        %484 = vdwg.mxu0
        %v485 = vadd.f32 %v336, %v447
        %v486 = vadd.f32 %v337, %v452
        %v487 = vadd.f32 %v338, %v457
        %v488 = vadd.f32 %v339, %v462
        %v489 = vadd.f32 %v340, %v467
        %v490 = vadd.f32 %v341, %v472
        %v491 = vadd.f32 %v342, %v477
        %v492 = vadd.f32 %v343, %v482
        %493 = vst [vmem:[#allocation2] sm:$0xff] %v485
        %494 = vst [vmem:[#allocation2 + $0x8] sm:$0xff] %v486
        %495 = vst [vmem:[#allocation2 + $0x10] sm:$0xff] %v487
        %496 = vst [vmem:[#allocation2 + $0x18] sm:$0xff] %v488
        %497 = vst [vmem:[#allocation2 + $0x20] sm:$0xff] %v489
        %498 = vst [vmem:[#allocation2 + $0x28] sm:$0xff] %v490
        %499 = vst [vmem:[#allocation2 + $0x30] sm:$0xff] %v491
        %500 = vst [vmem:[#allocation2 + $0x38] sm:$0xff] %v492
        %p501 = scmp.eq.s32.totalorder %s24, 2
        // Predicated region
        $region37: #{tpu_custom_call.1} parent=31 // pred_check
          %p502 = pneg %p501
        $region38: #{tpu_custom_call.1} parent=31 // pred_check_branch
          %504 = sbr.rel (%p502) target = $region40
        $region39: #{tpu_custom_call.1} parent=31 // pred_region
          %v505 = vld [vmem:[#allocation2] sm:$0xff]
          %v506 = vld [vmem:[#allocation2 + $0x8] sm:$0xff]
          %v507 = vld [vmem:[#allocation2 + $0x10] sm:$0xff]
          %v508 = vld [vmem:[#allocation2 + $0x18] sm:$0xff]
          %v509 = vld [vmem:[#allocation2 + $0x20] sm:$0xff]
          %v510 = vld [vmem:[#allocation2 + $0x28] sm:$0xff]
          %v511 = vld [vmem:[#allocation2 + $0x30] sm:$0xff]
          %v512 = vld [vmem:[#allocation2 + $0x38] sm:$0xff]
          %513 = vst [vmem:[%s204] sm:$0xff] %v505
          %514 = vst [vmem:[%s204 + $0x8] sm:$0xff] %v506
          %515 = vst [vmem:[%s204 + $0x10] sm:$0xff] %v507
          %516 = vst [vmem:[%s204 + $0x18] sm:$0xff] %v508
          %517 = vst [vmem:[%s204 + $0x20] sm:$0xff] %v509
          %518 = vst [vmem:[%s204 + $0x28] sm:$0xff] %v510
          %519 = vst [vmem:[%s204 + $0x30] sm:$0xff] %v511
          %520 = vst [vmem:[%s204 + $0x38] sm:$0xff] %v512
        $region40: #{tpu_custom_call.1} parent=31 // pred_fallthru
          _
        %s521 = sand.u32 %s120, 1
        %s522 = scalar_lea.sflag [#allocation4], %s521
        %s523 = sand.u32 %s120, 1
        %s524 = smul.addr %s523, 64
        %s525 = scalar_lea.vmem [#allocation3], %s524
        // Predicated region
        $region41: #{tpu_custom_call.1} parent=31 // pred_check
          %p526 = pneg %p130
        $region42: #{tpu_custom_call.1} parent=31 // pred_check_branch
          %528 = sbr.rel (%p526) target = $region44
        $region43: #{tpu_custom_call.1} parent=31 // pred_region
          %s530 = ssub.s32 1024, 1024
          %531 = vsyncadd %s522, %s530
          %s532 = smul.addr %s23, 8
          %s533 = smul.addr %s22, 64
          %s534 = sadd.s32 %s532, %s533
          %s535 = smul.addr %s534, 128
          %s536 = scalar_lea.hbm %s3, %s535
          %s537 = sshll.u32 %s525, 4
          %s538 = int_to_ptr.vmem [resolvable:$true] %s537
          %543 = dma.vmem_to_hbm [thread:$0]  %s538, 1024, %s536, %s522, 128, 128, 8
        $region44: #{tpu_custom_call.1} parent=31 // pred_fallthru
          _
      $region32: #{tpu_custom_call.1} parent=5 // pred_fallthru
        _
      %p544 = scmp.le.s32.totalorder 2, %s12
      // Predicated region
      $region45: #{tpu_custom_call.1} parent=5 // pred_check
        %p545 = pneg %p544
      $region46: #{tpu_custom_call.1} parent=5 // pred_check_branch
        %547 = sbr.rel (%p545) target = $region48
      $region47: #{tpu_custom_call.1} parent=5 // pred_region
        %s548 = ssub.s32 %s12, 2
        // Predicated region
        $region49: #{tpu_custom_call.1} parent=47 // pred_check
          %p549 = pneg %p136
        $region50: #{tpu_custom_call.1} parent=47 // pred_check_branch
          %551 = sbr.rel (%p549) target = $region52
        $region51: #{tpu_custom_call.1} parent=47 // pred_region
          %s552 = sand.u32 %s121, 1
          %s553 = scalar_lea.sflag [#allocation4], %s552
          %s554 = sand.u32 %s121, 1
          %s555 = smul.addr %s554, 64
          %s556 = scalar_lea.vmem [#allocation3], %s555
          %557 = dma.done %s553, 1024
        $region52: #{tpu_custom_call.1} parent=47 // pred_fallthru
          _
      $region48: #{tpu_custom_call.1} parent=5 // pred_fallthru
        _
    $region6: #{tpu_custom_call.1} parent=1 // loop_footer
      %s16 = sadd.s32 1, %s12
    $region7: #{tpu_custom_call.1} parent=1 // loop_footer_branch
      %11 = sbr.rel target = $region3
    $region8: #{tpu_custom_call.1} parent=1 // loop_exit
      _
    %558 = vsyncpa [#allocation4], 1
    %s559 = scalar_lea.sflag [#allocation4], 1
    %560 = vsyncpa %s559, 1

// kernel: tpu_custom_call.1
$region0: #{tpu_custom_call.1}
  #allocation0 [shape = 'u32[]', space=smem, size = 0x4, offset = 0x4, fixed_abs, tag = 'smem constant byte address 0x4 - core index']
  #allocation1 [shape = 'u32[144,128]{1,0:T(1,128)}', space=vmem, size = 0x12000, scoped, tag = 'internal scratch']
  #allocation2 [shape = 'f32[64,128]{1,0:T(8,128)}', space=vmem, size = 0x8000, scoped, tag = 'scratch operand']
  %s0 = inlined_call_operand.vmem [shape: f32[2,18,18,8,12], index: 0, kind: input, shape index: {}]
  %s1 = inlined_call_operand.vmem [shape: f32[3,36,128], index: 1, kind: input, shape index: {}]
  %s2 = inlined_call_operand.vmem [shape: f32[1,128], index: 2, kind: input, shape index: {}]
  %s3 = inlined_call_operand.hbm [shape: f32[2,8,64,128], index: 3, kind: output, shape index: {}]
  %s4 = sld [smem:[#allocation0]]
  $region53: #{tpu_custom_call.1} parent=0
    _
  %s6 = ssub.s32 1, %s4
  %s7 = scalar_select 0, %s6, %s4
  $region1: #{tpu_custom_call.1} parent=0
    #allocation3 [shape = 'u8[65536]{0}', space=vmem, size = 0x10000, scoped, tag = 'output window, operand 0']
    #allocation4 [shape = 's32[2]{0}', space=sflag, size = 0x8, scoped, tag = 'scoped memory for tpu_custom_call.1']
    %8 = vsyncpa [#allocation4], 0
    %s9 = scalar_lea.sflag [#allocation4], 1
    %10 = vsyncpa %s9, 0
    loop: start=0, step=1, limit=50
    $region2: #{tpu_custom_call.1} parent=1 // loop_pre_header
      _
    $region3: #{tpu_custom_call.1} parent=1 // loop_header
      %s12 = sphi 0, %s16
      %p13 = scmp.ge.s32.totalorder %s12, 50
      %s19 = sphi 0, %s38
      %s20 = sphi 0, %s34
      %s21 = sphi 0, %s30
      %s22 = sphi 0, %s19
      %s23 = sphi 0, %s20
      %s24 = sphi 0, %s21
      %s25 = sphi 0, %s22
      %s26 = sphi 0, %s23
      %s27 = sphi 0, %s24
      %s47 = sphi 0, %s49
      %s50 = sphi 0, %s47
      %s51 = sphi 0, %s50
      %s67 = sphi 0, %s51
      %s71 = sphi 0, %s71
      %s73 = sphi 0, %s71
      %s74 = sphi 0, %s73
      %s88 = sphi 0, %s74
      %s92 = sphi 0, %s92
      %s94 = sphi 0, %s92
      %s95 = sphi 0, %s94
      %s109 = sphi 0, %s95
      %s117 = sphi 0, %s119
      %s120 = sphi 0, %s117
      %s121 = sphi 0, %s120
      %s137 = sphi 0, %s121
    $region4: #{tpu_custom_call.1} parent=1 // loop_header_branch
      %15 = sbr.rel (%p13) target = $region8
    $region5: #{tpu_custom_call.1} parent=1 // loop_body
      %s17 = ssub.s32 %s12, 1
      %s18 = ssub.s32 %s12, 2
      %s28 = sadd.s32 1, %s21
      %p29 = scmp.ge.s32.totalorder %s28, 3
      %s30 = scalar_select %p29, 0, %s28
      %s31 = sadd.s32 1, %s20
      %s32 = scalar_select %p29, %s31, %s20
      %p33 = scmp.ge.s32.totalorder %s32, 8
      %s34 = scalar_select %p33, 0, %s32
      %s35 = sadd.s32 1, %s19
      %s36 = scalar_select %p33, %s35, %s19
      %p37 = scmp.ge.s32.totalorder %s36, 2
      %s38 = scalar_select %p37, 0, %s36
      %s39 = smul.u32 %s20, 2
      %s40 = sadd.s32 %s39, %s21
      %s41 = smul.u32 %s34, 2
      %s42 = sadd.s32 %s41, %s30
      %s43 = ssub.s32 %s19, %s38
      %s44 = ssub.s32 %s40, %s42
      %s45 = sor.u32 %s43, %s44
      %p46 = scmp.eq.s32.totalorder %s45, 0
      %s48 = sadd.s32 %s47, 1
      %s49 = scalar_select %p46, %s47, %s48
      %p52 = pneg %p46
      %p53 = scmp.eq.s32.totalorder %s12, 47
      %p54 = por %p52, %p53
      %p55 = scmp.ne.s32.totalorder %s47, %s50
      %p56 = scmp.eq.s32.totalorder %s12, 0
      %p57 = por %p55, %p56
      %p58 = scmp.ne.s32.totalorder %s47, %s50
      %p59 = scmp.eq.s32.totalorder %s17, 47
      %p60 = por %p58, %p59
      %p61 = scmp.ne.s32.totalorder %s50, %s51
      %p62 = scmp.eq.s32.totalorder %s17, 0
      %p63 = por %p61, %p62
      %p64 = scmp.ne.s32.totalorder %s50, %s51
      %p65 = scmp.eq.s32.totalorder %s18, 47
      %p66 = por %p64, %p65
      %p68 = scmp.ne.s32.totalorder %s51, %s67
      %p69 = scmp.eq.s32.totalorder %s18, 0
      %p70 = por %p68, %p69
      %s72 = sadd.s32 %s71, 1
      %p75 = scmp.eq.s32.totalorder %s12, 47
      %p76 = scmp.ne.s32.totalorder %s71, %s73
      %p77 = scmp.eq.s32.totalorder %s12, 0
      %p78 = por %p76, %p77
      %p79 = scmp.ne.s32.totalorder %s71, %s73
      %p80 = scmp.eq.s32.totalorder %s17, 47
      %p81 = por %p79, %p80
      %p82 = scmp.ne.s32.totalorder %s73, %s74
      %p83 = scmp.eq.s32.totalorder %s17, 0
      %p84 = por %p82, %p83
      %p85 = scmp.ne.s32.totalorder %s73, %s74
      %p86 = scmp.eq.s32.totalorder %s18, 47
      %p87 = por %p85, %p86
      %p89 = scmp.ne.s32.totalorder %s74, %s88
      %p90 = scmp.eq.s32.totalorder %s18, 0
      %p91 = por %p89, %p90
      %s93 = sadd.s32 %s92, 1
      %p96 = scmp.eq.s32.totalorder %s12, 47
      %p97 = scmp.ne.s32.totalorder %s92, %s94
      %p98 = scmp.eq.s32.totalorder %s12, 0
      %p99 = por %p97, %p98
      %p100 = scmp.ne.s32.totalorder %s92, %s94
      %p101 = scmp.eq.s32.totalorder %s17, 47
      %p102 = por %p100, %p101
      %p103 = scmp.ne.s32.totalorder %s94, %s95
      %p104 = scmp.eq.s32.totalorder %s17, 0
      %p105 = por %p103, %p104
      %p106 = scmp.ne.s32.totalorder %s94, %s95
      %p107 = scmp.eq.s32.totalorder %s18, 47
      %p108 = por %p106, %p107
      %p110 = scmp.ne.s32.totalorder %s95, %s109
      %p111 = scmp.eq.s32.totalorder %s18, 0
      %p112 = por %p110, %p111
      %s113 = ssub.s32 %s19, %s38
      %s114 = ssub.s32 %s20, %s34
      %s115 = sor.u32 %s113, %s114
      %p116 = scmp.eq.s32.totalorder %s115, 0
      %s118 = sadd.s32 %s117, 1
      %s119 = scalar_select %p116, %s117, %s118
      %p122 = pneg %p116
      %p123 = scmp.eq.s32.totalorder %s12, 47
      %p124 = por %p122, %p123
      %p125 = scmp.ne.s32.totalorder %s117, %s120
      %p126 = scmp.eq.s32.totalorder %s12, 0
      %p127 = por %p125, %p126
      %p128 = scmp.ne.s32.totalorder %s117, %s120
      %p129 = scmp.eq.s32.totalorder %s17, 47
      %p130 = por %p128, %p129
      %p131 = scmp.ne.s32.totalorder %s120, %s121
      %p132 = scmp.eq.s32.totalorder %s17, 0
      %p133 = por %p131, %p132
      %p134 = scmp.ne.s32.totalorder %s120, %s121
      %p135 = scmp.eq.s32.totalorder %s18, 47
      %p136 = por %p134, %p135
      %p138 = scmp.ne.s32.totalorder %s121, %s137
      %p139 = scmp.eq.s32.totalorder %s18, 0
      %p140 = por %p138, %p139
      %p141 = scmp.le.s32.totalorder 1, %s12
      %p142 = scmp.lt.s32.totalorder %s12, 49
      %p143 = pnand %p141, %p142
      %p144 = pneg %p143
      // Predicated region
      $region9: #{tpu_custom_call.1} parent=5 // pred_check
        _
      $region10: #{tpu_custom_call.1} parent=5 // pred_check_branch
        %146 = sbr.rel (%p143) target = $region12
      $region11: #{tpu_custom_call.1} parent=5 // pred_region
        %s147 = ssub.s32 %s12, 1
        // Predicated region
        $region13: #{tpu_custom_call.1} parent=11 // pred_check
          %p148 = pneg %p84
        $region14: #{tpu_custom_call.1} parent=11 // pred_check_branch
          %150 = sbr.rel (%p148) target = $region16
        $region15: #{tpu_custom_call.1} parent=11 // pred_region
          _
        $region16: #{tpu_custom_call.1} parent=11 // pred_fallthru
          _
        // Predicated region
        $region17: #{tpu_custom_call.1} parent=11 // pred_check
          %p151 = pneg %p105
        $region18: #{tpu_custom_call.1} parent=11 // pred_check_branch
          %153 = sbr.rel (%p151) target = $region20
        $region19: #{tpu_custom_call.1} parent=11 // pred_region
          _
        $region20: #{tpu_custom_call.1} parent=11 // pred_fallthru
          _
      $region12: #{tpu_custom_call.1} parent=5 // pred_fallthru
        _
      %p154 = scmp.lt.s32.totalorder %s12, 48
      // Predicated region
      $region21: #{tpu_custom_call.1} parent=5 // pred_check
        %p155 = pneg %p154
      $region22: #{tpu_custom_call.1} parent=5 // pred_check_branch
        %157 = sbr.rel (%p155) target = $region24
      $region23: #{tpu_custom_call.1} parent=5 // pred_region
        // Predicated region
        $region25: #{tpu_custom_call.1} parent=23 // pred_check
          %p158 = pneg %p57
        $region26: #{tpu_custom_call.1} parent=23 // pred_check_branch
          %160 = sbr.rel (%p158) target = $region28
        $region27: #{tpu_custom_call.1} parent=23 // pred_region
          %s161 = smul.u32 %s20, 2
          %s162 = sadd.s32 %s161, %s21
          %p163 = scmp.lt.s32.totalorder %s19, 1
          %s164 = scalar_select %p163, %s19, 1
          %p165 = scmp.lt.s32.totalorder %s162, 17
          %s166 = scalar_select %p165, %s162, 17
          %s167 = smul.addr %s166, 18
          %s168 = smul.addr %s164, 324
          %s169 = sadd.s32 %s167, %s168
          %s170 = smul.addr %s169, 8
          %s171 = scalar_lea.vmem %s0, %s170
          %s172 = smul.u32 %s20, 2
          %s173 = sadd.s32 %s172, %s21
        $region28: #{tpu_custom_call.1} parent=23 // pred_fallthru
          _
      $region24: #{tpu_custom_call.1} parent=5 // pred_fallthru
        _
      %p174 = scmp.le.s32.totalorder 1, %s12
      %p175 = scmp.lt.s32.totalorder %s12, 49
      %p176 = pnand %p174, %p175
      %p177 = pneg %p176
      // Predicated region
      $region29: #{tpu_custom_call.1} parent=5 // pred_check
        _
      $region30: #{tpu_custom_call.1} parent=5 // pred_check_branch
        %179 = sbr.rel (%p176) target = $region32
      $region31: #{tpu_custom_call.1} parent=5 // pred_region
        %s180 = ssub.s32 %s12, 1
        %s181 = smul.u32 %s23, 2
        %s182 = sadd.s32 %s181, %s24
        %p183 = scmp.lt.s32.totalorder %s22, 1
        %s184 = scalar_select %p183, %s22, 1
        %p185 = scmp.lt.s32.totalorder %s182, 17
        %s186 = scalar_select %p185, %s182, 17
        %s187 = smul.addr %s186, 18
        %s188 = smul.addr %s184, 324
        %s189 = sadd.s32 %s187, %s188
        %s190 = smul.addr %s189, 8
        %s191 = scalar_lea.vmem %s0, %s190
        %p192 = pneg %p63
        %p193 = pneg %p60
        %p194 = pneg %p84
        %p195 = pneg %p81
        %p196 = pneg %p105
        %p197 = pneg %p102
        %p198 = pneg %p133
        %p199 = pneg %p130
        %s200 = sand.u32 %s120, 1
        %s201 = scalar_lea.sflag [#allocation4], %s200
        %s202 = sand.u32 %s120, 1
        %s203 = smul.addr %s202, 64
        %s204 = scalar_lea.vmem [#allocation3], %s203
        %s205 = smul.u32 %s23, 2
        %s206 = sadd.s32 %s205, %s24
        %p207 = scmp.lt.s32.totalorder %s22, 1
        %s208 = scalar_select %p207, %s22, 1
        %p209 = scmp.lt.s32.totalorder %s206, 17
        %s210 = scalar_select %p209, %s206, 17
        %s211 = smul.addr %s210, 18
        %s212 = smul.addr %s208, 324
        %s213 = sadd.s32 %s211, %s212
        %s214 = smul.addr %s213, 8
        %s215 = scalar_lea.vmem %s0, %s214
        %s216 = smul.u32 %s23, 2
        %s217 = sadd.s32 %s216, %s24
        %p218 = scmp.eq.s32.totalorder %s24, 0
        // Predicated region
        $region33: #{tpu_custom_call.1} parent=31 // pred_check
          %p219 = pneg %p218
        $region34: #{tpu_custom_call.1} parent=31 // pred_check_branch
          %221 = sbr.rel (%p219) target = $region36
        $region35: #{tpu_custom_call.1} parent=31 // pred_region
          %v222 = vld [vmem:[%s2] sm:$0x1]
          %v224 = vlaneseq
          %v225 = vshrl.u32 %v224, 7
          %v226 = vsub.s32 0, %v225
          %v227 = vrot.slane %v222, %v226
          %229 = vst [vmem:[#allocation2] sm:$0xff] %v227
          %230 = vst [vmem:[#allocation2 + $0x8] sm:$0xff] %v227
          %231 = vst [vmem:[#allocation2 + $0x10] sm:$0xff] %v227
          %232 = vst [vmem:[#allocation2 + $0x18] sm:$0xff] %v227
          %233 = vst [vmem:[#allocation2 + $0x20] sm:$0xff] %v227
          %234 = vst [vmem:[#allocation2 + $0x28] sm:$0xff] %v227
          %235 = vst [vmem:[#allocation2 + $0x30] sm:$0xff] %v227
          %236 = vst [vmem:[#allocation2 + $0x38] sm:$0xff] %v227
        $region36: #{tpu_custom_call.1} parent=31 // pred_fallthru
          _
        %v237 = vld [vmem:[%s215] sm:$0xff]
        %v238 = vld [vmem:[%s215 + $0x8] sm:$0xff]
        %v239 = vld [vmem:[%s215 + $0x10] sm:$0xff]
        %v240 = vld [vmem:[%s215 + $0x18] sm:$0xff]
        %v241 = vld [vmem:[%s215 + $0x20] sm:$0xff]
        %v242 = vld [vmem:[%s215 + $0x28] sm:$0xff]
        %v243 = vld [vmem:[%s215 + $0x30] sm:$0xff]
        %v244 = vld [vmem:[%s215 + $0x38] sm:$0xff]
        %v245 = vld [vmem:[%s215 + $0x40] sm:$0xff]
        %v246 = vld [vmem:[%s215 + $0x48] sm:$0xff]
        %v247 = vld [vmem:[%s215 + $0x50] sm:$0xff]
        %v248 = vld [vmem:[%s215 + $0x58] sm:$0xff]
        %v249 = vld [vmem:[%s215 + $0x60] sm:$0xff]
        %v250 = vld [vmem:[%s215 + $0x68] sm:$0xff]
        %v251 = vld [vmem:[%s215 + $0x70] sm:$0xff]
        %v252 = vld [vmem:[%s215 + $0x78] sm:$0xff]
        %v253 = vld [vmem:[%s215 + $0x80] sm:$0xff]
        %262 = vrot.lane.b32.xlu0 %v238, 12
        %v263 = vpop.permute.xlu0 %262
        %264 = vrot.lane.b32.xlu0 %v240, 12
        %v265 = vpop.permute.xlu0 %264
        %266 = vrot.lane.b32.xlu0 %v242, 12
        %v267 = vpop.permute.xlu0 %266
        %268 = vrot.lane.b32.xlu0 %v244, 12
        %v269 = vpop.permute.xlu0 %268
        %270 = vrot.lane.b32.xlu0 %v246, 12
        %v271 = vpop.permute.xlu0 %270
        %272 = vrot.lane.b32.xlu0 %v248, 12
        %v273 = vpop.permute.xlu0 %272
        %274 = vrot.lane.b32.xlu0 %v250, 12
        %v275 = vpop.permute.xlu0 %274
        %276 = vrot.lane.b32.xlu0 %v252, 12
        %v277 = vpop.permute.xlu0 %276
        %294 = vrot.lane.b32.xlu0 %v239, 24
        %v295 = vpop.permute.xlu0 %294
        %296 = vrot.lane.b32.xlu0 %v241, 24
        %v297 = vpop.permute.xlu0 %296
        %298 = vrot.lane.b32.xlu0 %v243, 24
        %v299 = vpop.permute.xlu0 %298
        %300 = vrot.lane.b32.xlu0 %v245, 24
        %v301 = vpop.permute.xlu0 %300
        %302 = vrot.lane.b32.xlu0 %v247, 24
        %v303 = vpop.permute.xlu0 %302
        %304 = vrot.lane.b32.xlu0 %v249, 24
        %v305 = vpop.permute.xlu0 %304
        %306 = vrot.lane.b32.xlu0 %v251, 24
        %v307 = vpop.permute.xlu0 %306
        %308 = vrot.lane.b32.xlu0 %v253, 24
        %v309 = vpop.permute.xlu0 %308
        %vm318 = vcmask 97280
        %v319 = vsel %vm318, %v237, %v263
        %v320 = vsel %vm318, %v239, %v265
        %v321 = vsel %vm318, %v241, %v267
        %v322 = vsel %vm318, %v243, %v269
        %v323 = vsel %vm318, %v245, %v271
        %v324 = vsel %vm318, %v247, %v273
        %v325 = vsel %vm318, %v249, %v275
        %v326 = vsel %vm318, %v251, %v277
        %vm327 = vcmask 195584
        %v328 = vsel %vm327, %v319, %v295
        %v329 = vsel %vm327, %v320, %v297
        %v330 = vsel %vm327, %v321, %v299
        %v331 = vsel %vm327, %v322, %v301
        %v332 = vsel %vm327, %v323, %v303
        %v333 = vsel %vm327, %v324, %v305
        %v334 = vsel %vm327, %v325, %v307
        %v335 = vsel %vm327, %v326, %v309
        %v336 = vld [vmem:[#allocation2] sm:$0xff]
        %v337 = vld [vmem:[#allocation2 + $0x8] sm:$0xff]
        %v338 = vld [vmem:[#allocation2 + $0x10] sm:$0xff]
        %v339 = vld [vmem:[#allocation2 + $0x18] sm:$0xff]
        %v340 = vld [vmem:[#allocation2 + $0x20] sm:$0xff]
        %v341 = vld [vmem:[#allocation2 + $0x28] sm:$0xff]
        %v342 = vld [vmem:[#allocation2 + $0x30] sm:$0xff]
        %v343 = vld [vmem:[#allocation2 + $0x38] sm:$0xff]
        %s344 = smul.u32 %s24, 40
        %s345 = scalar_lea.vmem %s1, %s344
        %v346 = vld [vmem:[%s345] sm:$0xff]
        %v347 = vld [vmem:[%s345 + $0x8] sm:$0xff]
        %v348 = vld [vmem:[%s345 + $0x10] sm:$0xff]
        %v349 = vld [vmem:[%s345 + $0x18] sm:$0xff]
        %v350 = vld [vmem:[%s345 + $0x20] sm:$0xf]
        %vm351 = vcmask 293888
        %v353 = vsel %vm351, %v328, 0
        %v356 = vsel %vm351, %v329, 0
        %v359 = vsel %vm351, %v330, 0
        %v362 = vsel %vm351, %v331, 0
        %v365 = vsel %vm351, %v332, 0
        %v368 = vsel %vm351, %v333, 0
        %v371 = vsel %vm351, %v334, 0
        %v374 = vsel %vm351, %v335, 0
        %vm376 = vcmask 1043456
        %v378 = vsel %vm376, %v350, 0
        %380 = vmatprep.subr.mxu0 0.0
        %381 = vmatpush1.msra.mxu0 0.0
        %382 = vmatprep.subr.mxu0 0.0
        %383 = vmatpush1.msra.mxu0 0.0
        %384 = vmatprep.subr.mxu0 0.0
        %385 = vmatpush1.msra.mxu0 0.0
        %386 = vmatprep.subr.mxu0 0.0
        %387 = vmatpush1.msra.mxu0 0.0
        %388 = vmatprep.subr.mxu0 0.0
        %389 = vmatpush1.msra.mxu0 0.0
        %390 = vmatprep.subr.mxu0 0.0
        %391 = vmatpush1.msra.mxu0 0.0
        %392 = vmatprep.subr.mxu0 0.0
        %393 = vmatpush1.msra.mxu0 0.0
        %394 = vmatprep.subr.mxu0 0.0
        %395 = vmatpush1.msra.mxu0 0.0
        %396 = vmatprep.subr.mxu0 0.0
        %397 = vmatpush1.msra.mxu0 0.0
        %398 = vmatprep.subr.mxu0 0.0
        %399 = vmatpush1.msra.mxu0 0.0
        %400 = vmatprep.subr.mxu0 0.0
        %401 = vmatpush1.msra.mxu0 0.0
        %402 = vmatprep.subr.mxu0 0.0
        %403 = vmatpush1.msra.mxu0 %v378
        %404 = vmatprep.subr.mxu0 0.0
        %405 = vmatpush1.msra.mxu0 %v349
        %406 = vmatprep.subr.mxu0 0.0
        %407 = vmatpush1.msra.mxu0 %v348
        %408 = vmatprep.subr.mxu0 0.0
        %409 = vmatpush1.msra.mxu0 %v347
        %410 = vmatprep.subr.mxu0 0.0
        %411 = vmatpush1.msra.mxu0 %v346
        %412 = vmatprep.subr.mxu0 0.0
        %413 = vmatpush2.msra.mxu0 0.0
        %414 = vmatprep.subr.mxu0 0.0
        %415 = vmatpush2.msra.mxu0 0.0
        %416 = vmatprep.subr.mxu0 0.0
        %417 = vmatpush2.msra.mxu0 0.0
        %418 = vmatprep.subr.mxu0 0.0
        %419 = vmatpush2.msra.mxu0 0.0
        %420 = vmatprep.subr.mxu0 0.0
        %421 = vmatpush2.msra.mxu0 0.0
        %422 = vmatprep.subr.mxu0 0.0
        %423 = vmatpush2.msra.mxu0 0.0
        %424 = vmatprep.subr.mxu0 0.0
        %425 = vmatpush2.msra.mxu0 0.0
        %426 = vmatprep.subr.mxu0 0.0
        %427 = vmatpush2.msra.mxu0 0.0
        %428 = vmatprep.subr.mxu0 0.0
        %429 = vmatpush2.msra.mxu0 0.0
        %430 = vmatprep.subr.mxu0 0.0
        %431 = vmatpush2.msra.mxu0 0.0
        %432 = vmatprep.subr.mxu0 0.0
        %433 = vmatpush2.msra.mxu0 0.0
        %434 = vmatprep.subr.mxu0 0.0
        %435 = vmatpush2.msra.mxu0 0.0
        %436 = vmatprep.subr.mxu0 0.0
        %437 = vmatpush2.msra.mxu0 0.0
        %438 = vmatprep.subr.mxu0 0.0
        %439 = vmatpush2.msra.mxu0 0.0
        %440 = vmatprep.subr.mxu0 0.0
        %441 = vmatpush2.msra.mxu0 0.0
        %442 = vmatprep.subr.mxu0 0.0
        %443 = vmatpush2.msra.mxu0 0.0
        %444 = vmatprep.mubr.f32.mxu0 0.0
        %445 = vmatmul.mubr.f32.gmra.mxu0 %v353
        %v446 = vpop.f32.mrf.mxu0
        %v447 = vadd.f32 0.0, %v446
        %v448 = vpop.f32.mrf.mxu0
        %449 = vmatprep.mubr.f32.mxu0 0.0
        %450 = vmatmul.mubr.f32.gmra.mxu0 %v356
        %v451 = vpop.f32.mrf.mxu0
        %v452 = vadd.f32 0.0, %v451
        %v453 = vpop.f32.mrf.mxu0
        %454 = vmatprep.mubr.f32.mxu0 0.0
        %455 = vmatmul.mubr.f32.gmra.mxu0 %v359
        %v456 = vpop.f32.mrf.mxu0
        %v457 = vadd.f32 0.0, %v456
        %v458 = vpop.f32.mrf.mxu0
        %459 = vmatprep.mubr.f32.mxu0 0.0
        %460 = vmatmul.mubr.f32.gmra.mxu0 %v362
        %v461 = vpop.f32.mrf.mxu0
        %v462 = vadd.f32 0.0, %v461
        %v463 = vpop.f32.mrf.mxu0
        %464 = vmatprep.mubr.f32.mxu0 0.0
        %465 = vmatmul.mubr.f32.gmra.mxu0 %v365
        %v466 = vpop.f32.mrf.mxu0
        %v467 = vadd.f32 0.0, %v466
        %v468 = vpop.f32.mrf.mxu0
        %469 = vmatprep.mubr.f32.mxu0 0.0
        %470 = vmatmul.mubr.f32.gmra.mxu0 %v368
        %v471 = vpop.f32.mrf.mxu0
        %v472 = vadd.f32 0.0, %v471
        %v473 = vpop.f32.mrf.mxu0
        %474 = vmatprep.mubr.f32.mxu0 0.0
        %475 = vmatmul.mubr.f32.gmra.mxu0 %v371
        %v476 = vpop.f32.mrf.mxu0
        %v477 = vadd.f32 0.0, %v476
        %v478 = vpop.f32.mrf.mxu0
        %479 = vmatprep.mubr.f32.mxu0 0.0
        %480 = vmatmul.mubr.f32.gmra.mxu0 %v374
        %v481 = vpop.f32.mrf.mxu0
        %v482 = vadd.f32 0.0, %v481
        %v483 = vpop.f32.mrf.mxu0
        %484 = vdwg.mxu0
        %v485 = vadd.f32 %v336, %v447
        %v486 = vadd.f32 %v337, %v452
        %v487 = vadd.f32 %v338, %v457
        %v488 = vadd.f32 %v339, %v462
        %v489 = vadd.f32 %v340, %v467
        %v490 = vadd.f32 %v341, %v472
        %v491 = vadd.f32 %v342, %v477
        %v492 = vadd.f32 %v343, %v482
        %493 = vst [vmem:[#allocation2] sm:$0xff] %v485
        %494 = vst [vmem:[#allocation2 + $0x8] sm:$0xff] %v486
        %495 = vst [vmem:[#allocation2 + $0x10] sm:$0xff] %v487
        %496 = vst [vmem:[#allocation2 + $0x18] sm:$0xff] %v488
        %497 = vst [vmem:[#allocation2 + $0x20] sm:$0xff] %v489
        %498 = vst [vmem:[#allocation2 + $0x28] sm:$0xff] %v490
        %499 = vst [vmem:[#allocation2 + $0x30] sm:$0xff] %v491
        %500 = vst [vmem:[#allocation2 + $0x38] sm:$0xff] %v492
        %p501 = scmp.eq.s32.totalorder %s24, 2
        // Predicated region
        $region37: #{tpu_custom_call.1} parent=31 // pred_check
          %p502 = pneg %p501
        $region38: #{tpu_custom_call.1} parent=31 // pred_check_branch
          %504 = sbr.rel (%p502) target = $region40
        $region39: #{tpu_custom_call.1} parent=31 // pred_region
          %v505 = vld [vmem:[#allocation2] sm:$0xff]
          %v506 = vld [vmem:[#allocation2 + $0x8] sm:$0xff]
          %v507 = vld [vmem:[#allocation2 + $0x10] sm:$0xff]
          %v508 = vld [vmem:[#allocation2 + $0x18] sm:$0xff]
          %v509 = vld [vmem:[#allocation2 + $0x20] sm:$0xff]
          %v510 = vld [vmem:[#allocation2 + $0x28] sm:$0xff]
          %v511 = vld [vmem:[#allocation2 + $0x30] sm:$0xff]
          %v512 = vld [vmem:[#allocation2 + $0x38] sm:$0xff]
          %513 = vst [vmem:[%s204] sm:$0xff] %v505
          %514 = vst [vmem:[%s204 + $0x8] sm:$0xff] %v506
          %515 = vst [vmem:[%s204 + $0x10] sm:$0xff] %v507
          %516 = vst [vmem:[%s204 + $0x18] sm:$0xff] %v508
          %517 = vst [vmem:[%s204 + $0x20] sm:$0xff] %v509
          %518 = vst [vmem:[%s204 + $0x28] sm:$0xff] %v510
          %519 = vst [vmem:[%s204 + $0x30] sm:$0xff] %v511
          %520 = vst [vmem:[%s204 + $0x38] sm:$0xff] %v512
        $region40: #{tpu_custom_call.1} parent=31 // pred_fallthru
          _
        %s521 = sand.u32 %s120, 1
        %s522 = scalar_lea.sflag [#allocation4], %s521
        %s523 = sand.u32 %s120, 1
        %s524 = smul.addr %s523, 64
        %s525 = scalar_lea.vmem [#allocation3], %s524
        // Predicated region
        $region41: #{tpu_custom_call.1} parent=31 // pred_check
          %p526 = pneg %p130
        $region42: #{tpu_custom_call.1} parent=31 // pred_check_branch
          %528 = sbr.rel (%p526) target = $region44
        $region43: #{tpu_custom_call.1} parent=31 // pred_region
          %s530 = ssub.s32 1024, 1024
          %531 = vsyncadd %s522, %s530
          %s532 = smul.addr %s23, 8
          %s533 = smul.addr %s22, 64
          %s534 = sadd.s32 %s532, %s533
          %s535 = smul.addr %s534, 128
          %s536 = scalar_lea.hbm %s3, %s535
          %s537 = sshll.u32 %s525, 4
          %s538 = int_to_ptr.vmem [resolvable:$true] %s537
          %543 = dma.vmem_to_hbm [thread:$0]  %s538, 1024, %s536, %s522, 128, 128, 8
        $region44: #{tpu_custom_call.1} parent=31 // pred_fallthru
          _
      $region32: #{tpu_custom_call.1} parent=5 // pred_fallthru
        _
      %p544 = scmp.le.s32.totalorder 2, %s12
      // Predicated region
      $region45: #{tpu_custom_call.1} parent=5 // pred_check
        %p545 = pneg %p544
      $region46: #{tpu_custom_call.1} parent=5 // pred_check_branch
        %547 = sbr.rel (%p545) target = $region48
      $region47: #{tpu_custom_call.1} parent=5 // pred_region
        %s548 = ssub.s32 %s12, 2
        // Predicated region
        $region49: #{tpu_custom_call.1} parent=47 // pred_check
          %p549 = pneg %p136
        $region50: #{tpu_custom_call.1} parent=47 // pred_check_branch
          %551 = sbr.rel (%p549) target = $region52
        $region51: #{tpu_custom_call.1} parent=47 // pred_region
          %s552 = sand.u32 %s121, 1
          %s553 = scalar_lea.sflag [#allocation4], %s552
          %s554 = sand.u32 %s121, 1
          %s555 = smul.addr %s554, 64
          %s556 = scalar_lea.vmem [#allocation3], %s555
          %557 = dma.done %s553, 1024
        $region52: #{tpu_custom_call.1} parent=47 // pred_fallthru
          _
      $region48: #{tpu_custom_call.1} parent=5 // pred_fallthru
        _
    $region6: #{tpu_custom_call.1} parent=1 // loop_footer
      %s16 = sadd.s32 1, %s12
    $region7: #{tpu_custom_call.1} parent=1 // loop_footer_branch
      %11 = sbr.rel target = $region3
    $region8: #{tpu_custom_call.1} parent=1 // loop_exit
      _
    %558 = vsyncpa [#allocation4], 1
    %s559 = scalar_lea.sflag [#allocation4], 1
    %560 = vsyncpa %s559, 1

</llo_original>
